<compile_context>
chip_gen: v7x
topology: tpu7x:2x2x1
jax: 0.10.0
libtpu: 0.0.40
codegen_flags: <defaults>
</compile_context>

<pallas_src>
import jax
import jax.numpy as jnp
from jax.experimental import pallas as pl
from jax.experimental.pallas import tpu as pltpu

_MIB = 1024 * 1024


def _attention_gate_kernel(g_ref, x_ref, wg_ref, wx_ref, bsum_ref,
                           wpsi_ref, bpsi_ref, out_ref):
    # g_ref:    (1, F_g, tl)    x_ref:    (1, F_l, tl)
    # wg_ref:   (F_int, F_g)    wx_ref:   (F_int, F_l)
    # bsum_ref: (F_int, 1)      wpsi_ref: (1, F_int)   bpsi_ref: (1, 1)
    # out_ref:  (1, F_l, tl)
    g = g_ref[0]                      # (F_g, tl)
    x = x_ref[0]                      # (F_l, tl)

    # 1x1 convs (+ folded BN) on gating signal and skip connection, fused bias.
    a = (jnp.dot(wg_ref[...], g, preferred_element_type=jnp.float32)
         + jnp.dot(wx_ref[...], x, preferred_element_type=jnp.float32)
         + bsum_ref[...])             # (F_int, tl)
    a = jnp.maximum(a, 0.0)           # relu(g1 + x1)

    # psi: 1x1 conv to one channel (+ folded BN) then sigmoid.
    # (1, F_int) @ (F_int, tl) on the MXU instead of VPU mul + XLU sublane-sum.
    logit = (jnp.dot(wpsi_ref[...], a, preferred_element_type=jnp.float32)
             + bpsi_ref[...])         # (1, tl)
    psi = 1.0 / (1.0 + jnp.exp(-logit))

    # Gate the skip connection (psi broadcast over the channel sublanes).
    out_ref[0] = (x.astype(jnp.float32) * psi).astype(out_ref.dtype)


def _vmem_budget():
    """Per-generation (vmem_limit_bytes, tile_budget_bytes)."""
    cap = 128 * _MIB
    try:
        info = pltpu.get_tpu_info()
        cap = int(getattr(info, "vmem_capacity_bytes", cap))
    except Exception:
        pass
    if cap <= 80 * _MIB:               # v7x-class: 64 MiB per TensorCore
        return 48 * _MIB, 36 * _MIB
    return 96 * _MIB, 72 * _MIB        # v5e / v6e: 128 MiB physical


def _pick_spatial_tile(L, N, F_g, F_l, F_int, dtype_bytes, tile_budget,
                       max_tile=8192, min_grid_steps=8):
    """VMEM-budget-derived lane tile (multiple of 128) with enough grid steps."""
    if L < 128:
        return L                       # full-extent block is always legal
    # Per-token bytes: double-buffered g/x/out tiles + f32 intermediates (a, psi, x upcast).
    per_token = dtype_bytes * 2 * (F_g + 2 * F_l) + 4 * (F_int + F_l + 2)
    # Weights / biases are tile-independent; reserve their (double-buffered) footprint.
    weight_bytes = 2 * 4 * (F_int * (F_g + F_l + 2) + 1)
    budget = max(tile_budget - weight_bytes, 128 * per_token)
    tl = budget // per_token
    tl = min(tl, max_tile, L)
    tl = max(128, (tl // 128) * 128)
    # Keep >= min_grid_steps so both v7x TensorCores get work and the DMA pipeline
    # has depth (per-step overhead ~0.35us is negligible next to an idle core).
    while tl > 128 and N * pl.cdiv(L, tl) < min_grid_steps:
        tl = max(128, ((tl // 2) // 128) * 128)
    return tl


def attention_gate_pallas(g_nchw, x_nchw, params):
    """g_nchw: (N, F_g, H, W), x_nchw: (N, F_l, H, W) -> (N, F_l, H, W)."""
    N, F_g, H, W = g_nchw.shape
    Nx, F_l, Hx, Wx = x_nchw.shape
    # TODO(synk): F.interpolate path (mismatched spatial sizes) not implemented.
    assert N == Nx and (H, W) == (Hx, Wx), "interpolate path not implemented"
    F_int = params["wg"].shape[0]
    L = H * W

    vmem_limit, tile_budget = _vmem_budget()
    dtype_bytes = jnp.dtype(x_nchw.dtype).itemsize
    tl = _pick_spatial_tile(L, N, F_g, F_l, F_int, dtype_bytes, tile_budget)

    # Native NCHW flattening — pure reshapes, no transpose / extra HBM traffic.
    g_m = g_nchw.reshape(N, F_g, L)
    x_m = x_nchw.reshape(N, F_l, L)

    grid = (N, pl.cdiv(L, tl))         # edge tile (if any) is masked by Pallas

    out_m = pl.pallas_call(
        _attention_gate_kernel,
        out_shape=jax.ShapeDtypeStruct((N, F_l, L), x_nchw.dtype),
        grid_spec=pltpu.PrefetchScalarGridSpec(
            num_scalar_prefetch=0,
            grid=grid,
            in_specs=[
                pl.BlockSpec((1, F_g, tl), lambda n, j: (n, 0, j)),
                pl.BlockSpec((1, F_l, tl), lambda n, j: (n, 0, j)),
                pl.BlockSpec((F_int, F_g), lambda n, j: (0, 0)),
                pl.BlockSpec((F_int, F_l), lambda n, j: (0, 0)),
                pl.BlockSpec((F_int, 1), lambda n, j: (0, 0)),
                pl.BlockSpec((1, F_int), lambda n, j: (0, 0)),
                pl.BlockSpec((1, 1), lambda n, j: (0, 0)),
            ],
            out_specs=pl.BlockSpec((1, F_l, tl), lambda n, j: (n, 0, j)),
        ),
        compiler_params=pltpu.CompilerParams(
            dimension_semantics=("parallel", "parallel"),
            vmem_limit_bytes=vmem_limit,
        ),
    )(g_m, x_m,
      params["wg"], params["wx"], params["b_sum"],
      params["wpsi"], params["bpsi"])

    return out_m.reshape(N, F_l, H, W)


def init_attention_gate_params(key, F_g, F_l, F_int, eps=1e-5):
    """Deterministic parameter init; BN folded into the 1x1 conv weights.

    BatchNorm2d in eval mode with fresh-module statistics
    (running_mean=0, running_var=1, gamma=1, beta=0):
        scale = gamma / sqrt(var + eps),   shift = beta - mean * scale
        W_eff = W * scale[out],            b_eff = b * scale + shift
    Weights are stored as (C_out, C_in) so the kernel does W @ tokens; the two
    projection biases are pre-summed (they always appear as bg + bx).
    """
    k1, k2, k3, k4, k5, k6 = jax.random.split(key, 6)
    scale = 1.0 / jnp.sqrt(1.0 + eps)  # gamma=1, var=1, mean=0, beta=0

    wg = 0.1 * jax.random.normal(k1, (F_int, F_g), jnp.float32)
    bg = 0.1 * jax.random.normal(k2, (F_int, 1), jnp.float32)
    wx = 0.1 * jax.random.normal(k3, (F_int, F_l), jnp.float32)
    bx = 0.1 * jax.random.normal(k4, (F_int, 1), jnp.float32)
    wpsi = 0.1 * jax.random.normal(k5, (1, F_int), jnp.float32)  # (1, C_in) row
    bpsi = 0.1 * jax.random.normal(k6, (1, 1), jnp.float32)

    return {
        "wg": wg * scale,
        "wx": wx * scale,
        "b_sum": (bg + bx) * scale,
        "wpsi": wpsi * scale,
        "bpsi": bpsi * scale,
    }


def attention_gate_ref(g_nchw, x_nchw, params):
    """Pure-JAX reference of the same folded forward pass (for checking)."""
    N, F_g, H, W = g_nchw.shape
    _, F_l, _, _ = x_nchw.shape
    L = H * W
    g_m = g_nchw.reshape(N, F_g, L)
    x_m = x_nchw.reshape(N, F_l, L)
    g1 = jnp.einsum("if,nfl->nil", params["wg"], g_m)
    x1 = jnp.einsum("if,nfl->nil", params["wx"], x_m)
    a = jnp.maximum(g1 + x1 + params["b_sum"][None], 0.0)
    logit = jnp.einsum("oi,nil->nol", params["wpsi"], a) + params["bpsi"][None]
    psi = jax.nn.sigmoid(logit)
    out = x_m * psi
    return out.reshape(N, F_l, H, W)


if __name__ == "__main__":
    # Small shapes consistent with the module: N=2, F_g=8, F_l=4, F_int=16, 16x16 spatial.
    N, F_g, F_l, F_int, H, W = 2, 8, 4, 16, 16, 16
    key = jax.random.PRNGKey(0)
    kg, kx, kp = jax.random.split(key, 3)

    g = jax.random.normal(kg, (N, F_g, H, W), jnp.float32)
    x = jax.random.normal(kx, (N, F_l, H, W), jnp.float32)
    params = init_attention_gate_params(kp, F_g, F_l, F_int)

    out = jax.block_until_ready(attention_gate_pallas(g, x, params))
    ref = attention_gate_ref(g, x, params)
    assert out.shape == (N, F_l, H, W)
    assert jnp.allclose(out, ref, atol=1e-5, rtol=1e-5)

    # Exercise the cdiv / masked-edge-tile path: L = 12*12 = 144 is not a multiple of 128.
    H2, W2 = 12, 12
    g2 = jax.random.normal(kg, (N, F_g, H2, W2), jnp.float32)
    x2 = jax.random.normal(kx, (N, F_l, H2, W2), jnp.float32)
    out2 = jax.block_until_ready(attention_gate_pallas(g2, x2, params))
    ref2 = attention_gate_ref(g2, x2, params)
    assert jnp.allclose(out2, ref2, atol=1e-5, rtol=1e-5)

    print("KERNEL_OK")
</pallas_src>

<mosaic_0001>
module attributes {stable_mosaic.version = 11 : i64} {
  func.func @_attention_gate_kernel(%arg0: i32, %arg1: i32, %arg2: memref<1x8x128xf32, #tpu.memory_space<vmem>>, %arg3: memref<1x4x128xf32, #tpu.memory_space<vmem>>, %arg4: memref<16x8xf32, #tpu.memory_space<vmem>>, %arg5: memref<16x4xf32, #tpu.memory_space<vmem>>, %arg6: memref<16x1xf32, #tpu.memory_space<vmem>>, %arg7: memref<1x16xf32, #tpu.memory_space<vmem>>, %arg8: memref<1x1xf32, #tpu.memory_space<vmem>>, %arg9: memref<1x4x128xf32, #tpu.memory_space<vmem>>) attributes {dimension_semantics = [#tpu.dimension_semantics<parallel>, #tpu.dimension_semantics<parallel>], iteration_bounds = array<i64: 2, 2>, scalar_prefetch = 0 : i64, scratch_operands = 0 : i64, tpu.core_type = #tpu.core_type<tc>, window_params = [{transform_indices = @transform_0, window_bounds = array<i64: 1, 8, 128>}, {transform_indices = @transform_1, window_bounds = array<i64: 1, 4, 128>}, {pipeline_mode = #tpu.pipeline_mode<synchronous>, transform_indices = @transform_2, window_bounds = array<i64: 16, 8>}, {pipeline_mode = #tpu.pipeline_mode<synchronous>, transform_indices = @transform_3, window_bounds = array<i64: 16, 4>}, {pipeline_mode = #tpu.pipeline_mode<synchronous>, transform_indices = @transform_4, window_bounds = array<i64: 16, 1>}, {pipeline_mode = #tpu.pipeline_mode<synchronous>, transform_indices = @transform_5, window_bounds = array<i64: 1, 16>}, {pipeline_mode = #tpu.pipeline_mode<synchronous>, transform_indices = @transform_6, window_bounds = array<i64: 1, 1>}, {transform_indices = @transform_7, window_bounds = array<i64: 1, 4, 128>}]} {
    %c0 = arith.constant 0 : index
    %c0_0 = arith.constant 0 : index
    %c0_1 = arith.constant 0 : index
    %0 = vector.load %arg2[%c0, %c0_0, %c0_1] : memref<1x8x128xf32, #tpu.memory_space<vmem>>, vector<1x8x128xf32>
    %1 = vector.shape_cast %0 : vector<1x8x128xf32> to vector<8x128xf32>
    %c0_2 = arith.constant 0 : index
    %c0_3 = arith.constant 0 : index
    %c0_4 = arith.constant 0 : index
    %2 = vector.load %arg3[%c0_2, %c0_3, %c0_4] : memref<1x4x128xf32, #tpu.memory_space<vmem>>, vector<1x4x128xf32>
    %3 = vector.shape_cast %2 : vector<1x4x128xf32> to vector<4x128xf32>
    %c0_5 = arith.constant 0 : index
    %c0_6 = arith.constant 0 : index
    %4 = vector.load %arg4[%c0_5, %c0_6] : memref<16x8xf32, #tpu.memory_space<vmem>>, vector<16x8xf32>
    %cst = arith.constant dense<0.000000e+00> : vector<16x128xf32>
    %5 = tpu.matmul %4, %1, %cst {dimension_numbers = #tpu.dot_dimension_numbers<[1], [0], [0], [1], [0, 0, 1, 1], [], []>} : vector<16x8xf32>, vector<8x128xf32>, vector<16x128xf32> -> vector<16x128xf32>
    %c0_7 = arith.constant 0 : index
    %c0_8 = arith.constant 0 : index
    %6 = vector.load %arg5[%c0_7, %c0_8] : memref<16x4xf32, #tpu.memory_space<vmem>>, vector<16x4xf32>
    %cst_9 = arith.constant dense<0.000000e+00> : vector<16x128xf32>
    %7 = tpu.matmul %6, %3, %cst_9 {dimension_numbers = #tpu.dot_dimension_numbers<[1], [0], [0], [1], [0, 0, 1, 1], [], []>} : vector<16x4xf32>, vector<4x128xf32>, vector<16x128xf32> -> vector<16x128xf32>
    %8 = arith.addf %5, %7 : vector<16x128xf32>
    %c0_10 = arith.constant 0 : index
    %c0_11 = arith.constant 0 : index
    %9 = vector.load %arg6[%c0_10, %c0_11] : memref<16x1xf32, #tpu.memory_space<vmem>>, vector<16x1xf32>
    %10 = vector.broadcast %9 : vector<16x1xf32> to vector<16x128xf32>
    %11 = arith.addf %8, %10 : vector<16x128xf32>
    %cst_12 = arith.constant 0.000000e+00 : f32
    %12 = vector.broadcast %cst_12 : f32 to vector<16x128xf32>
    %13 = arith.maximumf %11, %12 : vector<16x128xf32>
    %c0_13 = arith.constant 0 : index
    %c0_14 = arith.constant 0 : index
    %14 = vector.load %arg7[%c0_13, %c0_14] : memref<1x16xf32, #tpu.memory_space<vmem>>, vector<1x16xf32>
    %cst_15 = arith.constant dense<0.000000e+00> : vector<1x128xf32>
    %15 = tpu.matmul %14, %13, %cst_15 {dimension_numbers = #tpu.dot_dimension_numbers<[1], [0], [0], [1], [0, 0, 1, 1], [], []>} : vector<1x16xf32>, vector<16x128xf32>, vector<1x128xf32> -> vector<1x128xf32>
    %c0_16 = arith.constant 0 : index
    %c0_17 = arith.constant 0 : index
    %16 = vector.load %arg8[%c0_16, %c0_17] : memref<1x1xf32, #tpu.memory_space<vmem>>, vector<1x1xf32>
    %17 = vector.broadcast %16 : vector<1x1xf32> to vector<1x128xf32>
    %18 = arith.addf %15, %17 : vector<1x128xf32>
    %cst_18 = arith.constant 0.000000e+00 : f32
    %19 = vector.broadcast %cst_18 : f32 to vector<1x128xf32>
    %20 = arith.subf %19, %18 : vector<1x128xf32>
    %21 = math.exp %20 : vector<1x128xf32>
    %cst_19 = arith.constant 1.000000e+00 : f32
    %22 = vector.broadcast %cst_19 : f32 to vector<1x128xf32>
    %23 = arith.addf %22, %21 : vector<1x128xf32>
    %cst_20 = arith.constant 1.000000e+00 : f32
    %24 = vector.broadcast %cst_20 : f32 to vector<1x128xf32>
    %25 = arith.divf %24, %23 : vector<1x128xf32>
    %26 = vector.broadcast %25 : vector<1x128xf32> to vector<4x128xf32>
    %27 = arith.mulf %3, %26 : vector<4x128xf32>
    %c0_21 = arith.constant 0 : index
    %c0_22 = arith.constant 0 : index
    %c0_23 = arith.constant 0 : index
    %28 = vector.load %arg9[%c0_21, %c0_22, %c0_23] : memref<1x4x128xf32, #tpu.memory_space<vmem>>, vector<1x4x128xf32>
    %29 = vector.shape_cast %28 : vector<1x4x128xf32> to vector<4x128xf32>
    %30 = vector.shape_cast %27 : vector<4x128xf32> to vector<1x4x128xf32>
    tpu.vector_store %arg9[%c0_21, %c0_22, %c0_23], %30 {strides = array<i32>} : memref<1x4x128xf32, #tpu.memory_space<vmem>>, vector<1x4x128xf32>,
    return
  }
  func.func @transform_0(%arg0: i32, %arg1: i32) -> (i32, i32, i32) {
    %c0_i32 = arith.constant 0 : i32
    %c0_i32_0 = arith.constant 0 : i32
    return %arg0, %c0_i32, %arg1 : i32, i32, i32
  }
  func.func @transform_1(%arg0: i32, %arg1: i32) -> (i32, i32, i32) {
    %c0_i32 = arith.constant 0 : i32
    %c0_i32_0 = arith.constant 0 : i32
    return %arg0, %c0_i32, %arg1 : i32, i32, i32
  }
  func.func @transform_2(%arg0: i32, %arg1: i32) -> (i32, i32) {
    %c0_i32 = arith.constant 0 : i32
    %c0_i32_0 = arith.constant 0 : i32
    %c0_i32_1 = arith.constant 0 : i32
    return %c0_i32, %c0_i32_0 : i32, i32
  }
  func.func @transform_3(%arg0: i32, %arg1: i32) -> (i32, i32) {
    %c0_i32 = arith.constant 0 : i32
    %c0_i32_0 = arith.constant 0 : i32
    %c0_i32_1 = arith.constant 0 : i32
    return %c0_i32, %c0_i32_0 : i32, i32
  }
  func.func @transform_4(%arg0: i32, %arg1: i32) -> (i32, i32) {
    %c0_i32 = arith.constant 0 : i32
    %c0_i32_0 = arith.constant 0 : i32
    %c0_i32_1 = arith.constant 0 : i32
    return %c0_i32, %c0_i32_0 : i32, i32
  }
  func.func @transform_5(%arg0: i32, %arg1: i32) -> (i32, i32) {
    %c0_i32 = arith.constant 0 : i32
    %c0_i32_0 = arith.constant 0 : i32
    %c0_i32_1 = arith.constant 0 : i32
    return %c0_i32, %c0_i32_0 : i32, i32
  }
  func.func @transform_6(%arg0: i32, %arg1: i32) -> (i32, i32) {
    %c0_i32 = arith.constant 0 : i32
    %c0_i32_0 = arith.constant 0 : i32
    %c0_i32_1 = arith.constant 0 : i32
    return %c0_i32, %c0_i32_0 : i32, i32
  }
  func.func @transform_7(%arg0: i32, %arg1: i32) -> (i32, i32, i32) {
    %c0_i32 = arith.constant 0 : i32
    %c0_i32_0 = arith.constant 0 : i32
    return %arg0, %c0_i32, %arg1 : i32, i32, i32
  }
}

</mosaic_0001>

<llo_original>
// kernel: tpu_custom_call.1
$region0: #{tpu_custom_call.1}
  #allocation0 [shape = 'u32[]', space=smem, size = 0x4, offset = 0x4, fixed_abs, tag = 'smem constant byte address 0x4 - core index']
  #allocation1 [shape = 'u32[144,128]{1,0:T(1,128)}', space=vmem, size = 0x12000, scoped, tag = 'internal scratch']
  #allocation2 [shape = 'f32[1,1]{1,0:T(1,128)S(1)}', space=vmem, size = 0x200, scoped, tag = 'scoped memory for tpu_custom_call.1']
  %s0 = inlined_call_operand.hbm [shape: f32[2,8,256], index: 0, kind: input, shape index: {}]
  %s1 = inlined_call_operand.hbm [shape: f32[2,4,256], index: 1, kind: input, shape index: {}]
  %s2 = inlined_call_operand.hbm [shape: f32[16,8], index: 2, kind: input, shape index: {}]
  %s3 = inlined_call_operand.hbm [shape: f32[16,4], index: 3, kind: input, shape index: {}]
  %s4 = inlined_call_operand.hbm [shape: f32[16,1], index: 4, kind: input, shape index: {}]
  %s5 = inlined_call_operand.hbm [shape: f32[1,16], index: 5, kind: input, shape index: {}]
  %s6 = inlined_call_operand.<no memory space> [shape: f32[1,1], index: 6, kind: input, shape index: {}]
  %s7 = inlined_call_operand.hbm [shape: f32[2,4,256], index: 7, kind: output, shape index: {}]
  %s8 = sld [smem:[#allocation0]]
  $region85: #{tpu_custom_call.1} parent=0
    _
  %s10 = ssub.s32 1, %s8
  %s11 = scalar_select 0, %s10, %s8
  %v12 = vstv %s6
  %13 = vst [vmem:[#allocation2] sm:$0x1] %v12
  $region1: #{tpu_custom_call.1} parent=0
    #allocation3 [shape = 'u8[8192]{0}', space=vmem, size = 0x2000, scoped, tag = 'input window, operand 0']
    #allocation4 [shape = 's32[2]{0}', space=sflag, size = 0x8, scoped, tag = 'scoped memory for tpu_custom_call.1']
    #allocation5 [shape = 's32[2]{0}', space=sflag, size = 0x8, scoped, tag = 'scoped memory for tpu_custom_call.1']
    #allocation6 [shape = 'u8[4096]{0}', space=vmem, size = 0x1000, scoped, tag = 'input window, operand 1']
    #allocation7 [shape = 's32[2]{0}', space=sflag, size = 0x8, scoped, tag = 'scoped memory for tpu_custom_call.1']
    #allocation8 [shape = 'u8[8192]{0}', space=vmem, size = 0x2000, scoped, tag = 'input window, operand 2, single buffered']
    #allocation9 [shape = 'u8[8192]{0}', space=vmem, size = 0x2000, scoped, tag = 'input window, operand 3, single buffered']
    #allocation10 [shape = 's32[1]{0}', space=sflag, size = 0x4, scoped, tag = 'scoped memory for tpu_custom_call.1']
    #allocation11 [shape = 'u8[8192]{0}', space=vmem, size = 0x2000, scoped, tag = 'input window, operand 4, single buffered']
    #allocation12 [shape = 'u8[512]{0}', space=vmem, size = 0x400, scoped, tag = 'input window, operand 5, single buffered']
    #allocation13 [shape = 's32[1]{0}', space=sflag, size = 0x4, scoped, tag = 'scoped memory for tpu_custom_call.1']
    #allocation14 [shape = 'u8[4096]{0}', space=vmem, size = 0x1000, scoped, tag = 'output window, operand 0']
    %14 = vsyncpa [#allocation4], 0
    %s15 = scalar_lea.sflag [#allocation4], 1
    %16 = vsyncpa %s15, 0
    %17 = vsyncpa [#allocation7], 0
    %s18 = scalar_lea.sflag [#allocation7], 1
    %19 = vsyncpa %s18, 0
    %20 = vsyncpa [#allocation10], 0
    %21 = vsyncpa [#allocation13], 0
    %22 = vsyncpa [#allocation5], 0
    %s23 = scalar_lea.sflag [#allocation5], 1
    %24 = vsyncpa %s23, 0
    loop: start=0, step=1, limit=6
    $region2: #{tpu_custom_call.1} parent=1 // loop_pre_header
      _
    $region3: #{tpu_custom_call.1} parent=1 // loop_header
      %s26 = sphi 0, %s30
      %p27 = scmp.ge.s32.totalorder %s26, 6
      %s33 = sphi 0, %s45
      %s34 = sphi 0, %s41
      %s35 = sphi 0, %s33
      %s36 = sphi 0, %s34
      %s37 = sphi 0, %s35
      %s38 = sphi 0, %s36
      %s50 = sphi 0, %s52
      %s53 = sphi 0, %s50
      %s54 = sphi 0, %s53
      %s70 = sphi 0, %s54
      %s78 = sphi 0, %s80
      %s81 = sphi 0, %s78
      %s82 = sphi 0, %s81
      %s98 = sphi 0, %s82
      %s102 = sphi 0, %s102
      %s104 = sphi 0, %s102
      %s105 = sphi 0, %s104
      %s119 = sphi 0, %s105
      %s123 = sphi 0, %s123
      %s125 = sphi 0, %s123
      %s126 = sphi 0, %s125
      %s140 = sphi 0, %s126
      %s144 = sphi 0, %s144
      %s146 = sphi 0, %s144
      %s147 = sphi 0, %s146
      %s161 = sphi 0, %s147
      %s165 = sphi 0, %s165
      %s167 = sphi 0, %s165
      %s168 = sphi 0, %s167
      %s182 = sphi 0, %s168
      %s186 = sphi 0, %s186
      %s188 = sphi 0, %s186
      %s189 = sphi 0, %s188
      %s203 = sphi 0, %s189
      %s211 = sphi 0, %s213
      %s214 = sphi 0, %s211
      %s215 = sphi 0, %s214
      %s231 = sphi 0, %s215
    $region4: #{tpu_custom_call.1} parent=1 // loop_header_branch
      %29 = sbr.rel (%p27) target = $region8
    $region5: #{tpu_custom_call.1} parent=1 // loop_body
      %s31 = ssub.s32 %s26, 1
      %s32 = ssub.s32 %s26, 2
      %s39 = sadd.s32 1, %s34
      %p40 = scmp.ge.s32.totalorder %s39, 2
      %s41 = scalar_select %p40, 0, %s39
      %s42 = sadd.s32 1, %s33
      %s43 = scalar_select %p40, %s42, %s33
      %p44 = scmp.ge.s32.totalorder %s43, 2
      %s45 = scalar_select %p44, 0, %s43
      %s46 = ssub.s32 %s33, %s45
      %s47 = ssub.s32 %s34, %s41
      %s48 = sor.u32 %s46, %s47
      %p49 = scmp.eq.s32.totalorder %s48, 0
      %s51 = sadd.s32 %s50, 1
      %s52 = scalar_select %p49, %s50, %s51
      %p55 = pneg %p49
      %p56 = scmp.eq.s32.totalorder %s26, 3
      %p57 = por %p55, %p56
      %p58 = scmp.ne.s32.totalorder %s50, %s53
      %p59 = scmp.eq.s32.totalorder %s26, 0
      %p60 = por %p58, %p59
      %p61 = scmp.ne.s32.totalorder %s50, %s53
      %p62 = scmp.eq.s32.totalorder %s31, 3
      %p63 = por %p61, %p62
      %p64 = scmp.ne.s32.totalorder %s53, %s54
      %p65 = scmp.eq.s32.totalorder %s31, 0
      %p66 = por %p64, %p65
      %p67 = scmp.ne.s32.totalorder %s53, %s54
      %p68 = scmp.eq.s32.totalorder %s32, 3
      %p69 = por %p67, %p68
      %p71 = scmp.ne.s32.totalorder %s54, %s70
      %p72 = scmp.eq.s32.totalorder %s32, 0
      %p73 = por %p71, %p72
      %s74 = ssub.s32 %s33, %s45
      %s75 = ssub.s32 %s34, %s41
      %s76 = sor.u32 %s74, %s75
      %p77 = scmp.eq.s32.totalorder %s76, 0
      %s79 = sadd.s32 %s78, 1
      %s80 = scalar_select %p77, %s78, %s79
      %p83 = pneg %p77
      %p84 = scmp.eq.s32.totalorder %s26, 3
      %p85 = por %p83, %p84
      %p86 = scmp.ne.s32.totalorder %s78, %s81
      %p87 = scmp.eq.s32.totalorder %s26, 0
      %p88 = por %p86, %p87
      %p89 = scmp.ne.s32.totalorder %s78, %s81
      %p90 = scmp.eq.s32.totalorder %s31, 3
      %p91 = por %p89, %p90
      %p92 = scmp.ne.s32.totalorder %s81, %s82
      %p93 = scmp.eq.s32.totalorder %s31, 0
      %p94 = por %p92, %p93
      %p95 = scmp.ne.s32.totalorder %s81, %s82
      %p96 = scmp.eq.s32.totalorder %s32, 3
      %p97 = por %p95, %p96
      %p99 = scmp.ne.s32.totalorder %s82, %s98
      %p100 = scmp.eq.s32.totalorder %s32, 0
      %p101 = por %p99, %p100
      %s103 = sadd.s32 %s102, 1
      %p106 = scmp.eq.s32.totalorder %s26, 3
      %p107 = scmp.ne.s32.totalorder %s102, %s104
      %p108 = scmp.eq.s32.totalorder %s26, 0
      %p109 = por %p107, %p108
      %p110 = scmp.ne.s32.totalorder %s102, %s104
      %p111 = scmp.eq.s32.totalorder %s31, 3
      %p112 = por %p110, %p111
      %p113 = scmp.ne.s32.totalorder %s104, %s105
      %p114 = scmp.eq.s32.totalorder %s31, 0
      %p115 = por %p113, %p114
      %p116 = scmp.ne.s32.totalorder %s104, %s105
      %p117 = scmp.eq.s32.totalorder %s32, 3
      %p118 = por %p116, %p117
      %p120 = scmp.ne.s32.totalorder %s105, %s119
      %p121 = scmp.eq.s32.totalorder %s32, 0
      %p122 = por %p120, %p121
      %s124 = sadd.s32 %s123, 1
      %p127 = scmp.eq.s32.totalorder %s26, 3
      %p128 = scmp.ne.s32.totalorder %s123, %s125
      %p129 = scmp.eq.s32.totalorder %s26, 0
      %p130 = por %p128, %p129
      %p131 = scmp.ne.s32.totalorder %s123, %s125
      %p132 = scmp.eq.s32.totalorder %s31, 3
      %p133 = por %p131, %p132
      %p134 = scmp.ne.s32.totalorder %s125, %s126
      %p135 = scmp.eq.s32.totalorder %s31, 0
      %p136 = por %p134, %p135
      %p137 = scmp.ne.s32.totalorder %s125, %s126
      %p138 = scmp.eq.s32.totalorder %s32, 3
      %p139 = por %p137, %p138
      %p141 = scmp.ne.s32.totalorder %s126, %s140
      %p142 = scmp.eq.s32.totalorder %s32, 0
      %p143 = por %p141, %p142
      %s145 = sadd.s32 %s144, 1
      %p148 = scmp.eq.s32.totalorder %s26, 3
      %p149 = scmp.ne.s32.totalorder %s144, %s146
      %p150 = scmp.eq.s32.totalorder %s26, 0
      %p151 = por %p149, %p150
      %p152 = scmp.ne.s32.totalorder %s144, %s146
      %p153 = scmp.eq.s32.totalorder %s31, 3
      %p154 = por %p152, %p153
      %p155 = scmp.ne.s32.totalorder %s146, %s147
      %p156 = scmp.eq.s32.totalorder %s31, 0
      %p157 = por %p155, %p156
      %p158 = scmp.ne.s32.totalorder %s146, %s147
      %p159 = scmp.eq.s32.totalorder %s32, 3
      %p160 = por %p158, %p159
      %p162 = scmp.ne.s32.totalorder %s147, %s161
      %p163 = scmp.eq.s32.totalorder %s32, 0
      %p164 = por %p162, %p163
      %s166 = sadd.s32 %s165, 1
      %p169 = scmp.eq.s32.totalorder %s26, 3
      %p170 = scmp.ne.s32.totalorder %s165, %s167
      %p171 = scmp.eq.s32.totalorder %s26, 0
      %p172 = por %p170, %p171
      %p173 = scmp.ne.s32.totalorder %s165, %s167
      %p174 = scmp.eq.s32.totalorder %s31, 3
      %p175 = por %p173, %p174
      %p176 = scmp.ne.s32.totalorder %s167, %s168
      %p177 = scmp.eq.s32.totalorder %s31, 0
      %p178 = por %p176, %p177
      %p179 = scmp.ne.s32.totalorder %s167, %s168
      %p180 = scmp.eq.s32.totalorder %s32, 3
      %p181 = por %p179, %p180
      %p183 = scmp.ne.s32.totalorder %s168, %s182
      %p184 = scmp.eq.s32.totalorder %s32, 0
      %p185 = por %p183, %p184
      %s187 = sadd.s32 %s186, 1
      %p190 = scmp.eq.s32.totalorder %s26, 3
      %p191 = scmp.ne.s32.totalorder %s186, %s188
      %p192 = scmp.eq.s32.totalorder %s26, 0
      %p193 = por %p191, %p192
      %p194 = scmp.ne.s32.totalorder %s186, %s188
      %p195 = scmp.eq.s32.totalorder %s31, 3
      %p196 = por %p194, %p195
      %p197 = scmp.ne.s32.totalorder %s188, %s189
      %p198 = scmp.eq.s32.totalorder %s31, 0
      %p199 = por %p197, %p198
      %p200 = scmp.ne.s32.totalorder %s188, %s189
      %p201 = scmp.eq.s32.totalorder %s32, 3
      %p202 = por %p200, %p201
      %p204 = scmp.ne.s32.totalorder %s189, %s203
      %p205 = scmp.eq.s32.totalorder %s32, 0
      %p206 = por %p204, %p205
      %s207 = ssub.s32 %s33, %s45
      %s208 = ssub.s32 %s34, %s41
      %s209 = sor.u32 %s207, %s208
      %p210 = scmp.eq.s32.totalorder %s209, 0
      %s212 = sadd.s32 %s211, 1
      %s213 = scalar_select %p210, %s211, %s212
      %p216 = pneg %p210
      %p217 = scmp.eq.s32.totalorder %s26, 3
      %p218 = por %p216, %p217
      %p219 = scmp.ne.s32.totalorder %s211, %s214
      %p220 = scmp.eq.s32.totalorder %s26, 0
      %p221 = por %p219, %p220
      %p222 = scmp.ne.s32.totalorder %s211, %s214
      %p223 = scmp.eq.s32.totalorder %s31, 3
      %p224 = por %p222, %p223
      %p225 = scmp.ne.s32.totalorder %s214, %s215
      %p226 = scmp.eq.s32.totalorder %s31, 0
      %p227 = por %p225, %p226
      %p228 = scmp.ne.s32.totalorder %s214, %s215
      %p229 = scmp.eq.s32.totalorder %s32, 3
      %p230 = por %p228, %p229
      %p232 = scmp.ne.s32.totalorder %s215, %s231
      %p233 = scmp.eq.s32.totalorder %s32, 0
      %p234 = por %p232, %p233
      %p235 = scmp.le.s32.totalorder 1, %s26
      %p236 = scmp.lt.s32.totalorder %s26, 5
      %p237 = pnand %p235, %p236
      %p238 = pneg %p237
      // Predicated region
      $region9: #{tpu_custom_call.1} parent=5 // pred_check
        _
      $region10: #{tpu_custom_call.1} parent=5 // pred_check_branch
        %240 = sbr.rel (%p237) target = $region12
      $region11: #{tpu_custom_call.1} parent=5 // pred_region
        %s241 = ssub.s32 %s26, 1
        // Predicated region
        $region13: #{tpu_custom_call.1} parent=11 // pred_check
          %p242 = pneg %p115
        $region14: #{tpu_custom_call.1} parent=11 // pred_check_branch
          %244 = sbr.rel (%p242) target = $region16
        $region15: #{tpu_custom_call.1} parent=11 // pred_region
          %s246 = ssub.s32 256, 256
          %247 = vsyncadd [#allocation7], %s246
          %s248 = sshll.u32 [#allocation8], 4
          %s249 = int_to_ptr.vmem [resolvable:$true] %s248
          %254 = dma.hbm_to_vmem [thread:$0]  %s2, 256, %s249, [#allocation7], 128, 128, 8
        $region16: #{tpu_custom_call.1} parent=11 // pred_fallthru
          _
        // Predicated region
        $region17: #{tpu_custom_call.1} parent=11 // pred_check
          %p255 = pneg %p136
        $region18: #{tpu_custom_call.1} parent=11 // pred_check_branch
          %257 = sbr.rel (%p255) target = $region20
        $region19: #{tpu_custom_call.1} parent=11 // pred_region
          %s259 = ssub.s32 256, 256
          %260 = vsyncadd [#allocation10], %s259
          %s261 = sshll.u32 [#allocation9], 4
          %s262 = int_to_ptr.vmem [resolvable:$true] %s261
          %267 = dma.hbm_to_vmem [thread:$0]  %s3, 256, %s262, [#allocation10], 128, 128, 8
        $region20: #{tpu_custom_call.1} parent=11 // pred_fallthru
          _
        // Predicated region
        $region21: #{tpu_custom_call.1} parent=11 // pred_check
          %p268 = pneg %p157
        $region22: #{tpu_custom_call.1} parent=11 // pred_check_branch
          %270 = sbr.rel (%p268) target = $region24
        $region23: #{tpu_custom_call.1} parent=11 // pred_region
          %s272 = ssub.s32 256, 256
          %273 = vsyncadd [#allocation10], %s272
          %s274 = sshll.u32 [#allocation11], 4
          %s275 = int_to_ptr.vmem [resolvable:$true] %s274
          %280 = dma.hbm_to_vmem [thread:$0]  %s4, 256, %s275, [#allocation10], 128, 128, 8
        $region24: #{tpu_custom_call.1} parent=11 // pred_fallthru
          _
        // Predicated region
        $region25: #{tpu_custom_call.1} parent=11 // pred_check
          %p281 = pneg %p178
        $region26: #{tpu_custom_call.1} parent=11 // pred_check_branch
          %283 = sbr.rel (%p281) target = $region28
        $region27: #{tpu_custom_call.1} parent=11 // pred_region
          %s285 = ssub.s32 16, 16
          %286 = vsyncadd [#allocation13], %s285
          %s288 = sshll.u32 [#allocation12], 4
          %s289 = int_to_ptr.vmem [resolvable:$true] %s288
          %291 = dma.hbm_to_vmem [thread:$0]  %s5, 16, %s289, [#allocation13]
        $region28: #{tpu_custom_call.1} parent=11 // pred_fallthru
          _
        // Predicated region
        $region29: #{tpu_custom_call.1} parent=11 // pred_check
          %p292 = pneg %p199
        $region30: #{tpu_custom_call.1} parent=11 // pred_check_branch
          %294 = sbr.rel (%p292) target = $region32
        $region31: #{tpu_custom_call.1} parent=11 // pred_region
          _
        $region32: #{tpu_custom_call.1} parent=11 // pred_fallthru
          _
      $region12: #{tpu_custom_call.1} parent=5 // pred_fallthru
        _
      %p295 = scmp.lt.s32.totalorder %s26, 4
      // Predicated region
      $region33: #{tpu_custom_call.1} parent=5 // pred_check
        %p296 = pneg %p295
      $region34: #{tpu_custom_call.1} parent=5 // pred_check_branch
        %298 = sbr.rel (%p296) target = $region36
      $region35: #{tpu_custom_call.1} parent=5 // pred_region
        // Predicated region
        $region37: #{tpu_custom_call.1} parent=35 // pred_check
          %p299 = pneg %p60
        $region38: #{tpu_custom_call.1} parent=35 // pred_check_branch
          %301 = sbr.rel (%p299) target = $region40
        $region39: #{tpu_custom_call.1} parent=35 // pred_region
          %s302 = sand.u32 %s50, 1
          %s303 = scalar_lea.sflag [#allocation4], %s302
          %s304 = sand.u32 %s50, 1
          %s305 = smul.addr %s304, 8
          %s306 = scalar_lea.vmem [#allocation3], %s305
          %s308 = ssub.s32 128, 128
          %309 = vsyncadd %s303, %s308
          %s310 = smul.addr %s33, 2
          %s311 = sadd.s32 %s34, %s310
          %s312 = smul.addr %s311, 128
          %s313 = scalar_lea.hbm %s0, %s312
          %s315 = sshll.u32 %s306, 4
          %s316 = int_to_ptr.vmem [resolvable:$true] %s315
          %318 = dma.hbm_to_vmem [thread:$0]  %s313, 128, %s316, %s303
        $region40: #{tpu_custom_call.1} parent=35 // pred_fallthru
          _
        // Predicated region
        $region41: #{tpu_custom_call.1} parent=35 // pred_check
          %p319 = pneg %p88
        $region42: #{tpu_custom_call.1} parent=35 // pred_check_branch
          %321 = sbr.rel (%p319) target = $region44
        $region43: #{tpu_custom_call.1} parent=35 // pred_region
          %s322 = sand.u32 %s26, 1
          %s323 = scalar_lea.sflag [#allocation7], %s322
          %s324 = sand.u32 %s78, 1
          %s325 = smul.addr %s324, 4
          %s326 = scalar_lea.vmem [#allocation6], %s325
          %s328 = ssub.s32 64, 64
          %329 = vsyncadd %s323, %s328
          %s330 = smul.addr %s33, 2
          %s331 = sadd.s32 %s34, %s330
          %s332 = smul.addr %s331, 64
          %s333 = scalar_lea.hbm %s1, %s332
          %s335 = sshll.u32 %s326, 4
          %s336 = int_to_ptr.vmem [resolvable:$true] %s335
          %338 = dma.hbm_to_vmem [thread:$0]  %s333, 64, %s336, %s323
        $region44: #{tpu_custom_call.1} parent=35 // pred_fallthru
          _
      $region36: #{tpu_custom_call.1} parent=5 // pred_fallthru
        _
      %p339 = scmp.le.s32.totalorder 1, %s26
      %p340 = scmp.lt.s32.totalorder %s26, 5
      %p341 = pnand %p339, %p340
      %p342 = pneg %p341
      // Predicated region
      $region45: #{tpu_custom_call.1} parent=5 // pred_check
        _
      $region46: #{tpu_custom_call.1} parent=5 // pred_check_branch
        %344 = sbr.rel (%p341) target = $region48
      $region47: #{tpu_custom_call.1} parent=5 // pred_region
        %s345 = ssub.s32 %s26, 1
        %s346 = sand.u32 %s53, 1
        %s347 = scalar_lea.sflag [#allocation4], %s346
        %s348 = sand.u32 %s53, 1
        %s349 = smul.addr %s348, 8
        %s350 = scalar_lea.vmem [#allocation3], %s349
        // Predicated region
        $region49: #{tpu_custom_call.1} parent=47 // pred_check
          %p351 = pneg %p66
        $region50: #{tpu_custom_call.1} parent=47 // pred_check_branch
          %353 = sbr.rel (%p351) target = $region52
        $region51: #{tpu_custom_call.1} parent=47 // pred_region
          %354 = dma.done %s347, 128
        $region52: #{tpu_custom_call.1} parent=47 // pred_fallthru
          _
        %s355 = sand.u32 %s31, 1
        %s356 = scalar_lea.sflag [#allocation7], %s355
        %s357 = sand.u32 %s81, 1
        %s358 = smul.addr %s357, 4
        %s359 = scalar_lea.vmem [#allocation6], %s358
        // Predicated region
        $region53: #{tpu_custom_call.1} parent=47 // pred_check
          %p360 = pneg %p94
        $region54: #{tpu_custom_call.1} parent=47 // pred_check_branch
          %362 = sbr.rel (%p360) target = $region56
        $region55: #{tpu_custom_call.1} parent=47 // pred_region
          %363 = dma.done %s356, 64
        $region56: #{tpu_custom_call.1} parent=47 // pred_fallthru
          _
        // Predicated region
        $region57: #{tpu_custom_call.1} parent=47 // pred_check
          %p364 = pneg %p115
        $region58: #{tpu_custom_call.1} parent=47 // pred_check_branch
          %366 = sbr.rel (%p364) target = $region60
        $region59: #{tpu_custom_call.1} parent=47 // pred_region
          %367 = dma.done [#allocation7], 256
        $region60: #{tpu_custom_call.1} parent=47 // pred_fallthru
          _
        // Predicated region
        $region61: #{tpu_custom_call.1} parent=47 // pred_check
          %p368 = pneg %p136
        $region62: #{tpu_custom_call.1} parent=47 // pred_check_branch
          %370 = sbr.rel (%p368) target = $region64
        $region63: #{tpu_custom_call.1} parent=47 // pred_region
          %371 = dma.done [#allocation10], 256
        $region64: #{tpu_custom_call.1} parent=47 // pred_fallthru
          _
        // Predicated region
        $region65: #{tpu_custom_call.1} parent=47 // pred_check
          %p372 = pneg %p157
        $region66: #{tpu_custom_call.1} parent=47 // pred_check_branch
          %374 = sbr.rel (%p372) target = $region68
        $region67: #{tpu_custom_call.1} parent=47 // pred_region
          %375 = dma.done [#allocation10], 256
        $region68: #{tpu_custom_call.1} parent=47 // pred_fallthru
          _
        // Predicated region
        $region69: #{tpu_custom_call.1} parent=47 // pred_check
          %p376 = pneg %p178
        $region70: #{tpu_custom_call.1} parent=47 // pred_check_branch
          %378 = sbr.rel (%p376) target = $region72
        $region71: #{tpu_custom_call.1} parent=47 // pred_region
          %379 = dma.done [#allocation13], 16
        $region72: #{tpu_custom_call.1} parent=47 // pred_fallthru
          _
        %s380 = sand.u32 %s53, 1
        %s381 = scalar_lea.sflag [#allocation4], %s380
        %s382 = sand.u32 %s53, 1
        %s383 = smul.addr %s382, 8
        %s384 = scalar_lea.vmem [#allocation3], %s383
        %p385 = pneg %p66
        %p386 = pneg %p63
        %s387 = sand.u32 %s31, 1
        %s388 = scalar_lea.sflag [#allocation7], %s387
        %s389 = sand.u32 %s81, 1
        %s390 = smul.addr %s389, 4
        %s391 = scalar_lea.vmem [#allocation6], %s390
        %p392 = pneg %p94
        %p393 = pneg %p91
        %p394 = pneg %p115
        %p395 = pneg %p112
        %p396 = pneg %p136
        %p397 = pneg %p133
        %p398 = pneg %p157
        %p399 = pneg %p154
        %p400 = pneg %p178
        %p401 = pneg %p175
        %p402 = pneg %p199
        %p403 = pneg %p196
        %p404 = pneg %p227
        %p405 = pneg %p224
        %s406 = sand.u32 %s214, 1
        %s407 = scalar_lea.sflag [#allocation5], %s406
        %s408 = sand.u32 %s214, 1
        %s409 = smul.addr %s408, 4
        %s410 = scalar_lea.vmem [#allocation14], %s409
        %v411 = vld [vmem:[%s350] sm:$0xff]
        %v412 = vld [vmem:[%s359] sm:$0xf]
        %v413 = vld [vmem:[#allocation8] sm:$0xff]
        %v414 = vld [vmem:[#allocation8 + $0x8] sm:$0xff]
        %v415 = vld [vmem:[#allocation9] sm:$0xff]
        %v416 = vld [vmem:[#allocation9 + $0x8] sm:$0xff]
        %vm417 = vcmask 31744
        %v419 = vsel %vm417, %v415, 0
        %v422 = vsel %vm417, %v416, 0
        %vm424 = vcmask 1043456
        %v426 = vsel %vm424, %v412, 0
        %428 = vmatprep.subr.mxu0 0.0
        %429 = vmatpush1.msra.mxu0 %v426
        %430 = vmatprep.subr.mxu0 0.0
        %431 = vmatpush1.msra.mxu0 0.0
        %432 = vmatprep.subr.mxu0 0.0
        %433 = vmatpush1.msra.mxu0 0.0
        %434 = vmatprep.subr.mxu0 0.0
        %435 = vmatpush1.msra.mxu0 0.0
        %436 = vmatprep.subr.mxu0 0.0
        %437 = vmatpush1.msra.mxu0 0.0
        %438 = vmatprep.subr.mxu0 0.0
        %439 = vmatpush1.msra.mxu0 0.0
        %440 = vmatprep.subr.mxu0 0.0
        %441 = vmatpush1.msra.mxu0 0.0
        %442 = vmatprep.subr.mxu0 0.0
        %443 = vmatpush1.msra.mxu0 0.0
        %444 = vmatprep.subr.mxu0 0.0
        %445 = vmatpush1.msra.mxu0 0.0
        %446 = vmatprep.subr.mxu0 0.0
        %447 = vmatpush1.msra.mxu0 0.0
        %448 = vmatprep.subr.mxu0 0.0
        %449 = vmatpush1.msra.mxu0 0.0
        %450 = vmatprep.subr.mxu0 0.0
        %451 = vmatpush1.msra.mxu0 0.0
        %452 = vmatprep.subr.mxu0 0.0
        %453 = vmatpush1.msra.mxu0 0.0
        %454 = vmatprep.subr.mxu0 0.0
        %455 = vmatpush1.msra.mxu0 0.0
        %456 = vmatprep.subr.mxu0 0.0
        %457 = vmatpush1.msra.mxu0 0.0
        %458 = vmatprep.subr.mxu0 0.0
        %459 = vmatpush1.msra.mxu0 0.0
        %460 = vmatprep.subr.mxu0 0.0
        %461 = vmatpush1.msra.mxu0 0.0
        %462 = vmatprep.subr.mxu0 0.0
        %463 = vmatpush1.msra.mxu0 0.0
        %464 = vmatprep.subr.mxu0 0.0
        %465 = vmatpush1.msra.mxu0 0.0
        %466 = vmatprep.subr.mxu0 0.0
        %467 = vmatpush1.msra.mxu0 0.0
        %468 = vmatprep.subr.mxu0 0.0
        %469 = vmatpush1.msra.mxu0 0.0
        %470 = vmatprep.subr.mxu0 0.0
        %471 = vmatpush1.msra.mxu0 0.0
        %472 = vmatprep.subr.mxu0 0.0
        %473 = vmatpush1.msra.mxu0 0.0
        %474 = vmatprep.subr.mxu0 0.0
        %475 = vmatpush1.msra.mxu0 0.0
        %476 = vmatprep.subr.mxu0 0.0
        %477 = vmatpush1.msra.mxu0 0.0
        %478 = vmatprep.subr.mxu0 0.0
        %479 = vmatpush1.msra.mxu0 0.0
        %480 = vmatprep.subr.mxu0 0.0
        %481 = vmatpush1.msra.mxu0 0.0
        %482 = vmatprep.subr.mxu0 0.0
        %483 = vmatpush1.msra.mxu0 0.0
        %484 = vmatprep.subr.mxu0 0.0
        %485 = vmatpush1.msra.mxu0 0.0
        %486 = vmatprep.subr.mxu0 0.0
        %487 = vmatpush1.msra.mxu0 0.0
        %488 = vmatprep.subr.mxu0 0.0
        %489 = vmatpush1.msra.mxu0 0.0
        %490 = vmatprep.subr.mxu0 0.0
        %491 = vmatpush1.msra.mxu0 0.0
        %492 = vmatprep.mubr.f32.mxu0 0.0
        %493 = vmatmul.mubr.f32.gmra.mrb[0].mxu0 %v419
        %v494 = vpop.f32.mrb[0].mxu0
        %v495 = vadd.f32 0.0, %v494
        %v496 = vpop.f32.mrb[0].mxu0
        %497 = vmatprep.mubr.f32.mxu0 0.0
        %498 = vmatmul.mubr.f32.gmra.mrb[0].mxu0 %v422
        %v499 = vpop.f32.mrb[0].mxu0
        %v500 = vadd.f32 0.0, %v499
        %v501 = vpop.f32.mrb[0].mxu0
        %502 = vdwg.mxu0
        %vm503 = vcmask 64512
        %v505 = vsel %vm503, %v413, 0
        %v508 = vsel %vm503, %v414, 0
        %510 = vmatprep.subr.mxu0 0.0
        %511 = vmatpush1.msra.mxu0 %v411
        %512 = vmatprep.subr.mxu0 0.0
        %513 = vmatpush1.msra.mxu0 0.0
        %514 = vmatprep.subr.mxu0 0.0
        %515 = vmatpush1.msra.mxu0 0.0
        %516 = vmatprep.subr.mxu0 0.0
        %517 = vmatpush1.msra.mxu0 0.0
        %518 = vmatprep.subr.mxu0 0.0
        %519 = vmatpush1.msra.mxu0 0.0
        %520 = vmatprep.subr.mxu0 0.0
        %521 = vmatpush1.msra.mxu0 0.0
        %522 = vmatprep.subr.mxu0 0.0
        %523 = vmatpush1.msra.mxu0 0.0
        %524 = vmatprep.subr.mxu0 0.0
        %525 = vmatpush1.msra.mxu0 0.0
        %526 = vmatprep.subr.mxu0 0.0
        %527 = vmatpush1.msra.mxu0 0.0
        %528 = vmatprep.subr.mxu0 0.0
        %529 = vmatpush1.msra.mxu0 0.0
        %530 = vmatprep.subr.mxu0 0.0
        %531 = vmatpush1.msra.mxu0 0.0
        %532 = vmatprep.subr.mxu0 0.0
        %533 = vmatpush1.msra.mxu0 0.0
        %534 = vmatprep.subr.mxu0 0.0
        %535 = vmatpush1.msra.mxu0 0.0
        %536 = vmatprep.subr.mxu0 0.0
        %537 = vmatpush1.msra.mxu0 0.0
        %538 = vmatprep.subr.mxu0 0.0
        %539 = vmatpush1.msra.mxu0 0.0
        %540 = vmatprep.subr.mxu0 0.0
        %541 = vmatpush1.msra.mxu0 0.0
        %542 = vmatprep.subr.mxu0 0.0
        %543 = vmatpush1.msra.mxu0 0.0
        %544 = vmatprep.subr.mxu0 0.0
        %545 = vmatpush1.msra.mxu0 0.0
        %546 = vmatprep.subr.mxu0 0.0
        %547 = vmatpush1.msra.mxu0 0.0
        %548 = vmatprep.subr.mxu0 0.0
        %549 = vmatpush1.msra.mxu0 0.0
        %550 = vmatprep.subr.mxu0 0.0
        %551 = vmatpush1.msra.mxu0 0.0
        %552 = vmatprep.subr.mxu0 0.0
        %553 = vmatpush1.msra.mxu0 0.0
        %554 = vmatprep.subr.mxu0 0.0
        %555 = vmatpush1.msra.mxu0 0.0
        %556 = vmatprep.subr.mxu0 0.0
        %557 = vmatpush1.msra.mxu0 0.0
        %558 = vmatprep.subr.mxu0 0.0
        %559 = vmatpush1.msra.mxu0 0.0
        %560 = vmatprep.subr.mxu0 0.0
        %561 = vmatpush1.msra.mxu0 0.0
        %562 = vmatprep.subr.mxu0 0.0
        %563 = vmatpush1.msra.mxu0 0.0
        %564 = vmatprep.subr.mxu0 0.0
        %565 = vmatpush1.msra.mxu0 0.0
        %566 = vmatprep.subr.mxu0 0.0
        %567 = vmatpush1.msra.mxu0 0.0
        %568 = vmatprep.subr.mxu0 0.0
        %569 = vmatpush1.msra.mxu0 0.0
        %570 = vmatprep.subr.mxu0 0.0
        %571 = vmatpush1.msra.mxu0 0.0
        %572 = vmatprep.subr.mxu0 0.0
        %573 = vmatpush1.msra.mxu0 0.0
        %574 = vmatprep.mubr.f32.mxu0 0.0
        %575 = vmatmul.mubr.f32.gmra.mrb[0].mxu0 %v505
        %v576 = vpop.f32.mrb[0].mxu0
        %v577 = vadd.f32 %v495, %v576
        %v578 = vpop.f32.mrb[0].mxu0
        %579 = vmatprep.mubr.f32.mxu0 0.0
        %580 = vmatmul.mubr.f32.gmra.mrb[0].mxu0 %v508
        %v581 = vpop.f32.mrb[0].mxu0
        %v582 = vadd.f32 %v500, %v581
        %v583 = vpop.f32.mrb[0].mxu0
        %584 = vdwg.mxu0
        %v585 = vld [vmem:[#allocation11] sm:$0xff]
        %v586 = vld [vmem:[#allocation11 + $0x8] sm:$0xff]
        %588 = vset.pattern.permute.xlu0 0
        %589 = vperm.xlu0 %588, %v585
        %v590 = vpop.permute.xlu0 %589
        %593 = vset.pattern.permute.xlu0 0
        %594 = vperm.xlu0 %593, %v586
        %v595 = vpop.permute.xlu0 %594
        %v597 = vadd.f32 %v577, %v590
        %v598 = vadd.f32 %v582, %v595
        %v599 = vmax.f32 %v597, 0.0
        %v600 = vmax.f32 %v598, 0.0
        %v601 = vld [vmem:[#allocation12] sm:$0x1]
        %v602 = vld [vmem:[#allocation2] sm:$0x1]
        %604 = vset.pattern.permute.xlu0 0
        %605 = vperm.xlu0 %604, %v602
        %v606 = vpop.permute.xlu0 %605
        %v608 = vlaneseq
        %v609 = vshrl.u32 %v608, 7
        %v610 = vsub.s32 0, %v609
        %v611 = vrot.slane %v606, %v610
        %vm612 = vcmask 130048
        %v614 = vsel %vm612, %v601, 0
        %616 = vmatprep.subr.mxu0 0.0
        %617 = vmatpush1.msra.mxu0 %v599
        %618 = vmatprep.subr.mxu0 0.0
        %619 = vmatpush1.msra.mxu0 %v600
        %620 = vmatprep.subr.mxu0 0.0
        %621 = vmatpush1.msra.mxu0 0.0
        %622 = vmatprep.subr.mxu0 0.0
        %623 = vmatpush1.msra.mxu0 0.0
        %624 = vmatprep.subr.mxu0 0.0
        %625 = vmatpush1.msra.mxu0 0.0
        %626 = vmatprep.subr.mxu0 0.0
        %627 = vmatpush1.msra.mxu0 0.0
        %628 = vmatprep.subr.mxu0 0.0
        %629 = vmatpush1.msra.mxu0 0.0
        %630 = vmatprep.subr.mxu0 0.0
        %631 = vmatpush1.msra.mxu0 0.0
        %632 = vmatprep.subr.mxu0 0.0
        %633 = vmatpush1.msra.mxu0 0.0
        %634 = vmatprep.subr.mxu0 0.0
        %635 = vmatpush1.msra.mxu0 0.0
        %636 = vmatprep.subr.mxu0 0.0
        %637 = vmatpush1.msra.mxu0 0.0
        %638 = vmatprep.subr.mxu0 0.0
        %639 = vmatpush1.msra.mxu0 0.0
        %640 = vmatprep.subr.mxu0 0.0
        %641 = vmatpush1.msra.mxu0 0.0
        %642 = vmatprep.subr.mxu0 0.0
        %643 = vmatpush1.msra.mxu0 0.0
        %644 = vmatprep.subr.mxu0 0.0
        %645 = vmatpush1.msra.mxu0 0.0
        %646 = vmatprep.subr.mxu0 0.0
        %647 = vmatpush1.msra.mxu0 0.0
        %648 = vmatprep.subr.mxu0 0.0
        %649 = vmatpush1.msra.mxu0 0.0
        %650 = vmatprep.subr.mxu0 0.0
        %651 = vmatpush1.msra.mxu0 0.0
        %652 = vmatprep.subr.mxu0 0.0
        %653 = vmatpush1.msra.mxu0 0.0
        %654 = vmatprep.subr.mxu0 0.0
        %655 = vmatpush1.msra.mxu0 0.0
        %656 = vmatprep.subr.mxu0 0.0
        %657 = vmatpush1.msra.mxu0 0.0
        %658 = vmatprep.subr.mxu0 0.0
        %659 = vmatpush1.msra.mxu0 0.0
        %660 = vmatprep.subr.mxu0 0.0
        %661 = vmatpush1.msra.mxu0 0.0
        %662 = vmatprep.subr.mxu0 0.0
        %663 = vmatpush1.msra.mxu0 0.0
        %664 = vmatprep.subr.mxu0 0.0
        %665 = vmatpush1.msra.mxu0 0.0
        %666 = vmatprep.subr.mxu0 0.0
        %667 = vmatpush1.msra.mxu0 0.0
        %668 = vmatprep.subr.mxu0 0.0
        %669 = vmatpush1.msra.mxu0 0.0
        %670 = vmatprep.subr.mxu0 0.0
        %671 = vmatpush1.msra.mxu0 0.0
        %672 = vmatprep.subr.mxu0 0.0
        %673 = vmatpush1.msra.mxu0 0.0
        %674 = vmatprep.subr.mxu0 0.0
        %675 = vmatpush1.msra.mxu0 0.0
        %676 = vmatprep.subr.mxu0 0.0
        %677 = vmatpush1.msra.mxu0 0.0
        %678 = vmatprep.subr.mxu0 0.0
        %679 = vmatpush1.msra.mxu0 0.0
        %680 = vmatprep.mubr.f32.mxu0 0.0
        %681 = vmatmul.mubr.f32.gmra.mrb[0].mxu0 %v614
        %v682 = vpop.f32.mrb[0].mxu0
        %v683 = vadd.f32 %v611, %v682
        %v684 = vpop.f32.mrb[0].mxu0
        %685 = vdwg.mxu0
        %v686 = vsub.f32 0.0, %v683
        %v687 = vmul.f32 %v686, 1.442695
        %v688 = vpow.pop %v687
        %v689 = vadd.f32 %v688, 1.0
        %v690 = vrcp.pop %v689
        %v691 = vmul.f32 1.0, %v690
        %v692 = vlaneseq
        %v693 = vshrl.u32 %v692, 7
        %v694 = vsub.s32 0, %v693
        %v695 = vrot.slane %v691, %v694
        %v696 = vmul.f32 %v412, %v695
        %697 = vst [vmem:[%s410] sm:$0xf] %v696
        %s698 = sand.u32 %s214, 1
        %s699 = scalar_lea.sflag [#allocation5], %s698
        %s700 = sand.u32 %s214, 1
        %s701 = smul.addr %s700, 4
        %s702 = scalar_lea.vmem [#allocation14], %s701
        // Predicated region
        $region73: #{tpu_custom_call.1} parent=47 // pred_check
          %p703 = pneg %p224
        $region74: #{tpu_custom_call.1} parent=47 // pred_check_branch
          %705 = sbr.rel (%p703) target = $region76
        $region75: #{tpu_custom_call.1} parent=47 // pred_region
          %s707 = ssub.s32 64, 64
          %708 = vsyncadd %s699, %s707
          %s709 = smul.addr %s35, 2
          %s710 = sadd.s32 %s36, %s709
          %s711 = smul.addr %s710, 64
          %s712 = scalar_lea.hbm %s7, %s711
          %s714 = sshll.u32 %s702, 4
          %s715 = int_to_ptr.vmem [resolvable:$true] %s714
          %717 = dma.vmem_to_hbm [thread:$0]  %s715, 64, %s712, %s699
        $region76: #{tpu_custom_call.1} parent=47 // pred_fallthru
          _
      $region48: #{tpu_custom_call.1} parent=5 // pred_fallthru
        _
      %p718 = scmp.le.s32.totalorder 2, %s26
      // Predicated region
      $region77: #{tpu_custom_call.1} parent=5 // pred_check
        %p719 = pneg %p718
      $region78: #{tpu_custom_call.1} parent=5 // pred_check_branch
        %721 = sbr.rel (%p719) target = $region80
      $region79: #{tpu_custom_call.1} parent=5 // pred_region
        %s722 = ssub.s32 %s26, 2
        // Predicated region
        $region81: #{tpu_custom_call.1} parent=79 // pred_check
          %p723 = pneg %p230
        $region82: #{tpu_custom_call.1} parent=79 // pred_check_branch
          %725 = sbr.rel (%p723) target = $region84
        $region83: #{tpu_custom_call.1} parent=79 // pred_region
          %s726 = sand.u32 %s215, 1
          %s727 = scalar_lea.sflag [#allocation5], %s726
          %s728 = sand.u32 %s215, 1
          %s729 = smul.addr %s728, 4
          %s730 = scalar_lea.vmem [#allocation14], %s729
          %731 = dma.done %s727, 64
        $region84: #{tpu_custom_call.1} parent=79 // pred_fallthru
          _
      $region80: #{tpu_custom_call.1} parent=5 // pred_fallthru
        _
    $region6: #{tpu_custom_call.1} parent=1 // loop_footer
      %s30 = sadd.s32 1, %s26
    $region7: #{tpu_custom_call.1} parent=1 // loop_footer_branch
      %25 = sbr.rel target = $region3
    $region8: #{tpu_custom_call.1} parent=1 // loop_exit
      _
    %732 = vsyncpa [#allocation4], 1
    %s733 = scalar_lea.sflag [#allocation4], 1
    %734 = vsyncpa %s733, 1
    %735 = vsyncpa [#allocation7], 1
    %s736 = scalar_lea.sflag [#allocation7], 1
    %737 = vsyncpa %s736, 1
    %738 = vsyncpa [#allocation10], 1
    %739 = vsyncpa [#allocation13], 1
    %740 = vsyncpa [#allocation5], 1
    %s741 = scalar_lea.sflag [#allocation5], 1
    %742 = vsyncpa %s741, 1

</llo_original>
